<compile_context>
chip_gen: v6e
topology: v6e:2x2x1
jax: 0.10.0
libtpu: 0.0.40
codegen_flags: <defaults>
</compile_context>

<pallas_src>
import jax
import jax.numpy as jnp
import numpy as np
from jax.experimental import pallas as pl
from jax.experimental.pallas import tpu as pltpu


def vfe_layer(inputs, mask, w, b, gamma, beta, eps=1e-5):
    B, K, T, D = inputs.shape
    U = w.shape[1]
    V = B * K                 # voxels
    N = V * T                 # points
    WD = T * D                # wide input row width  (128 in the demo)
    WO = T * 2 * U            # wide output row width (256 in the demo)
    f32 = jnp.float32

    inputs = inputs.astype(f32)
    x_wide = inputs.reshape(V, WD)               # free row-major metadata reshape
    m2 = mask.reshape(V, T).astype(f32)          # 2-D mask (no size-1 lane dim)

    # Tiny host-built matrices that bake the point->lane mapping into the MXU op
    # (so the kernels never reshape/relayout values).
    w = w.astype(f32)
    b = b.astype(f32)
    w1 = jnp.kron(jnp.eye(T, dtype=f32), w)                          # (T*D, T*U)
    b1 = jnp.tile(b, T).reshape(1, T * U)
    wcat = jnp.concatenate([w, w], axis=1)                           # (D, 2U) duplicated
    w2 = jnp.kron(jnp.eye(T, dtype=f32), wcat)                       # (T*D, T*2U)
    b2 = jnp.tile(jnp.concatenate([b, b]), T).reshape(1, WO)
    spread = jnp.kron(jnp.eye(T, dtype=f32), jnp.ones((1, 2 * U), f32))  # (T, T*2U)

    # ------------------------------------------------------------------ pass 1
    vt1 = min(4096, V)                       # ~32K points/step (T=8): ~2 MiB/buf
    g1 = pl.cdiv(V, vt1)
    ragged1 = (V % vt1) != 0

    def stats_kernel(x_ref, w_ref, b_ref, sum_ref, ssq_ref):
        i = pl.program_id(0)

        @pl.when(i == 0)
        def _():
            sum_ref[...] = jnp.zeros_like(sum_ref)
            ssq_ref[...] = jnp.zeros_like(ssq_ref)

        h = jnp.dot(x_ref[...], w_ref[...], preferred_element_type=f32)
        h = jnp.maximum(h + b_ref[...], 0.0)                 # (vt1, T*U)
        if ragged1:
            # Last (partially out-of-bounds) tile: discard garbage rows.
            rid = i * vt1 + jax.lax.broadcasted_iota(jnp.int32, h.shape, 0)
            h = jnp.where(rid < V, h, 0.0)
        sum_ref[...] += jnp.sum(h, axis=0, keepdims=True)
        ssq_ref[...] += jnp.sum(h * h, axis=0, keepdims=True)

    sums, ssqs = pl.pallas_call(
        stats_kernel,
        out_shape=(jax.ShapeDtypeStruct((1, T * U), f32),
                   jax.ShapeDtypeStruct((1, T * U), f32)),
        grid_spec=pltpu.PrefetchScalarGridSpec(
            num_scalar_prefetch=0,
            grid=(g1,),
            in_specs=[
                pl.BlockSpec((vt1, WD), lambda i: (i, 0)),
                pl.BlockSpec((T * D, T * U), lambda i: (0, 0)),
                pl.BlockSpec((1, T * U), lambda i: (0, 0)),
            ],
            out_specs=[pl.BlockSpec((1, T * U), lambda i: (0, 0)),
                       pl.BlockSpec((1, T * U), lambda i: (0, 0))],
        ),
        compiler_params=pltpu.CompilerParams(
            dimension_semantics=("arbitrary",)),     # accumulator axis
    )(x_wide, w1, b1)

    # ---- glue (tiny, f32): fold stats into BN scale/shift ---------------------
    # NOTE: E[x^2]-mean^2 in f32 can lose precision for very large N / large
    # activations; acceptable here (values are well scaled).
    mean = sums.reshape(T, U).sum(0) / N
    ex2 = ssqs.reshape(T, U).sum(0) / N
    var = jnp.maximum(ex2 - mean * mean, 0.0)                  # biased batch var
    inv = gamma.astype(f32) / jnp.sqrt(var + eps)
    scale = inv
    shift = beta.astype(f32) - mean * inv
    scale_w = jnp.tile(jnp.concatenate([scale, scale]), T).reshape(1, WO)
    shift_w = jnp.tile(jnp.concatenate([shift, shift]), T).reshape(1, WO)

    # ------------------------------------------------------------------ pass 2
    vt2 = min(2048, V)                       # ~16K points/step: ~3 MiB/buf pair
    g2 = pl.cdiv(V, vt2)

    def out_kernel(x_ref, m_ref, w_ref, b_ref, sc_ref, sh_ref, sp_ref, o_ref):
        # x_ref: (vt2, T*D)  m_ref: (vt2, T)  w_ref: (T*D, T*2U)
        # b/sc/sh: (1, T*2U)  sp_ref: (T, T*2U)  o_ref: (vt2, T*2U)
        h = jnp.dot(x_ref[...], w_ref[...], preferred_element_type=f32)
        h = jnp.maximum(h + b_ref[...], 0.0)
        pw = h * sc_ref[...] + sh_ref[...]                     # (vt2, T*2U)
        # max over T for every channel: lane residue-class reduction via cyclic
        # rolls (XLU) — leaves the per-voxel max replicated at every lane.
        r = pw
        s = 2 * U
        while s < WO:
            r = jnp.maximum(r, pltpu.roll(r, s, axis=1))
            s *= 2
        lane = jax.lax.broadcasted_iota(jnp.int32, pw.shape, 1)
        is_pointwise = (lane % (2 * U)) < U                    # first half of each 2U block
        m_wide = jnp.dot(m_ref[...], sp_ref[...],              # mask -> per-lane
                         preferred_element_type=f32)
        o_ref[...] = (jnp.where(is_pointwise, pw, r) * m_wide).astype(o_ref.dtype)

    out = pl.pallas_call(
        out_kernel,
        out_shape=jax.ShapeDtypeStruct((V, WO), f32),
        grid_spec=pltpu.PrefetchScalarGridSpec(
            num_scalar_prefetch=0,
            grid=(g2,),
            in_specs=[
                pl.BlockSpec((vt2, WD), lambda i: (i, 0)),
                pl.BlockSpec((vt2, T), lambda i: (i, 0)),
                pl.BlockSpec((T * D, WO), lambda i: (0, 0)),
                pl.BlockSpec((1, WO), lambda i: (0, 0)),
                pl.BlockSpec((1, WO), lambda i: (0, 0)),
                pl.BlockSpec((1, WO), lambda i: (0, 0)),
                pl.BlockSpec((T, WO), lambda i: (0, 0)),
            ],
            out_specs=pl.BlockSpec((vt2, WO), lambda i: (i, 0)),
        ),
        compiler_params=pltpu.CompilerParams(
            dimension_semantics=("parallel",)),
    )(x_wide, m2, w2, b2, scale_w, shift_w, spread)

    # Row-major metadata reshape back to the module's (B, K, T, 2U) layout (free).
    return out.reshape(B, K, T, 2 * U)


def vfe_layer_ref(inputs, mask, w, b, gamma, beta, eps=1e-5):
    """Pure-JAX reference mirroring the PyTorch forward (train-mode BN)."""
    h = jnp.maximum(inputs @ w + b, 0.0)
    mean = jnp.mean(h, axis=(0, 1, 2))
    var = jnp.var(h, axis=(0, 1, 2))
    pw = (h - mean) / jnp.sqrt(var + eps) * gamma + beta
    agg = jnp.max(pw, axis=2, keepdims=True)
    rep = jnp.broadcast_to(agg, pw.shape)
    cat = jnp.concatenate([pw, rep], axis=-1)
    return cat * mask.astype(jnp.float32)


if __name__ == "__main__":
    # Small shapes consistent with VFELayer(in_channels=16, out_channels=32):
    #   inputs (B, K, T, D) = (2, 8, 8, 16), mask (B, K, T, 1), units = 16.
    B, K, T, D = 2, 8, 8, 16
    out_channels = 32
    U = out_channels // 2

    key = jax.random.PRNGKey(0)
    k_x, k_m, k_w, k_b = jax.random.split(key, 4)

    inputs = jax.random.normal(k_x, (B, K, T, D), dtype=jnp.float32)
    mask = jax.random.uniform(k_m, (B, K, T, 1)) > 0.3          # bool mask, like torch

    # Deterministic parameter init (shapes from the module's __init__).
    w = jax.random.normal(k_w, (D, U), dtype=jnp.float32) * 0.1  # Linear weight (D -> U)
    b = jax.random.normal(k_b, (U,), dtype=jnp.float32) * 0.1    # Linear bias
    gamma = jnp.ones((U,), dtype=jnp.float32)                    # BatchNorm2d weight init
    beta = jnp.zeros((U,), dtype=jnp.float32)                    # BatchNorm2d bias init

    out = vfe_layer(inputs, mask, w, b, gamma, beta)
    out = jax.block_until_ready(out)

    ref = vfe_layer_ref(inputs, mask, w, b, gamma, beta)
    np.testing.assert_allclose(np.asarray(out), np.asarray(ref), rtol=1e-5, atol=1e-5)
    assert out.shape == (B, K, T, out_channels)

    print("KERNEL_OK")
</pallas_src>

<mosaic_0001>
module attributes {stable_mosaic.version = 11 : i64} {
  func.func @stats_kernel(%arg0: i32, %arg1: memref<16x128xf32, #tpu.memory_space<vmem>>, %arg2: memref<128x128xf32, #tpu.memory_space<vmem>>, %arg3: memref<1x128xf32, #tpu.memory_space<vmem>>, %arg4: memref<1x128xf32, #tpu.memory_space<vmem>>, %arg5: memref<1x128xf32, #tpu.memory_space<vmem>>) attributes {dimension_semantics = [#tpu.dimension_semantics<arbitrary>], iteration_bounds = array<i64: 1>, scalar_prefetch = 0 : i64, scratch_operands = 0 : i64, tpu.core_type = #tpu.core_type<tc>, window_params = [{transform_indices = @transform_0, window_bounds = array<i64: 16, 128>}, {pipeline_mode = #tpu.pipeline_mode<synchronous>, transform_indices = @transform_1, window_bounds = array<i64: 128, 128>}, {pipeline_mode = #tpu.pipeline_mode<synchronous>, transform_indices = @transform_2, window_bounds = array<i64: 1, 128>}, {pipeline_mode = #tpu.pipeline_mode<synchronous>, transform_indices = @transform_3, window_bounds = array<i64: 1, 128>}, {pipeline_mode = #tpu.pipeline_mode<synchronous>, transform_indices = @transform_4, window_bounds = array<i64: 1, 128>}]} {
    %c0_i32 = arith.constant 0 : i32
    %0 = arith.cmpi eq, %arg0, %c0_i32 : i32
    %1 = arith.extui %0 : i1 to i32
    %c0_i32_0 = arith.constant 0 : i32
    %2 = arith.cmpi ne, %1, %c0_i32_0 : i32
    scf.if %2 {
      %cst_17 = arith.constant 0.000000e+00 : f32
      %22 = vector.broadcast %cst_17 : f32 to vector<1x128xf32>
      %c0_18 = arith.constant 0 : index
      %c0_19 = arith.constant 0 : index
      %23 = vector.load %arg4[%c0_18, %c0_19] : memref<1x128xf32, #tpu.memory_space<vmem>>, vector<1x128xf32>
      tpu.vector_store %arg4[%c0_18, %c0_19], %22 {strides = array<i32>} : memref<1x128xf32, #tpu.memory_space<vmem>>, vector<1x128xf32>,
      %cst_20 = arith.constant 0.000000e+00 : f32
      %24 = vector.broadcast %cst_20 : f32 to vector<1x128xf32>
      %c0_21 = arith.constant 0 : index
      %c0_22 = arith.constant 0 : index
      %25 = vector.load %arg5[%c0_21, %c0_22] : memref<1x128xf32, #tpu.memory_space<vmem>>, vector<1x128xf32>
      tpu.vector_store %arg5[%c0_21, %c0_22], %24 {strides = array<i32>} : memref<1x128xf32, #tpu.memory_space<vmem>>, vector<1x128xf32>,
    } else {
    }
    %c0 = arith.constant 0 : index
    %c0_1 = arith.constant 0 : index
    %3 = vector.load %arg1[%c0, %c0_1] : memref<16x128xf32, #tpu.memory_space<vmem>>, vector<16x128xf32>
    %c0_2 = arith.constant 0 : index
    %c0_3 = arith.constant 0 : index
    %4 = vector.load %arg2[%c0_2, %c0_3] : memref<128x128xf32, #tpu.memory_space<vmem>>, vector<128x128xf32>
    %cst = arith.constant dense<0.000000e+00> : vector<16x128xf32>
    %5 = tpu.matmul %3, %4, %cst {dimension_numbers = #tpu.dot_dimension_numbers<[1], [0], [0], [1], [0, 0, 1, 1], [], []>} : vector<16x128xf32>, vector<128x128xf32>, vector<16x128xf32> -> vector<16x128xf32>
    %c0_4 = arith.constant 0 : index
    %c0_5 = arith.constant 0 : index
    %6 = vector.load %arg3[%c0_4, %c0_5] : memref<1x128xf32, #tpu.memory_space<vmem>>, vector<1x128xf32>
    %7 = vector.broadcast %6 : vector<1x128xf32> to vector<16x128xf32>
    %8 = arith.addf %5, %7 : vector<16x128xf32>
    %cst_6 = arith.constant 0.000000e+00 : f32
    %9 = vector.broadcast %cst_6 : f32 to vector<16x128xf32>
    %10 = arith.maximumf %8, %9 : vector<16x128xf32>
    %c0_7 = arith.constant 0 : index
    %c0_8 = arith.constant 0 : index
    %11 = vector.load %arg4[%c0_7, %c0_8] : memref<1x128xf32, #tpu.memory_space<vmem>>, vector<1x128xf32>
    %cst_9 = arith.constant dense<0.000000e+00> : vector<128xf32>
    %12 = vector.multi_reduction <add>, %10, %cst_9 [0] : vector<16x128xf32> to vector<128xf32>
    %13 = vector.shape_cast %12 : vector<128xf32> to vector<1x128xf32>
    %14 = arith.addf %11, %13 : vector<1x128xf32>
    %c0_10 = arith.constant 0 : index
    %c0_11 = arith.constant 0 : index
    %15 = vector.load %arg4[%c0_10, %c0_11] : memref<1x128xf32, #tpu.memory_space<vmem>>, vector<1x128xf32>
    tpu.vector_store %arg4[%c0_10, %c0_11], %14 {strides = array<i32>} : memref<1x128xf32, #tpu.memory_space<vmem>>, vector<1x128xf32>,
    %c0_12 = arith.constant 0 : index
    %c0_13 = arith.constant 0 : index
    %16 = vector.load %arg5[%c0_12, %c0_13] : memref<1x128xf32, #tpu.memory_space<vmem>>, vector<1x128xf32>
    %17 = arith.mulf %10, %10 : vector<16x128xf32>
    %cst_14 = arith.constant dense<0.000000e+00> : vector<128xf32>
    %18 = vector.multi_reduction <add>, %17, %cst_14 [0] : vector<16x128xf32> to vector<128xf32>
    %19 = vector.shape_cast %18 : vector<128xf32> to vector<1x128xf32>
    %20 = arith.addf %16, %19 : vector<1x128xf32>
    %c0_15 = arith.constant 0 : index
    %c0_16 = arith.constant 0 : index
    %21 = vector.load %arg5[%c0_15, %c0_16] : memref<1x128xf32, #tpu.memory_space<vmem>>, vector<1x128xf32>
    tpu.vector_store %arg5[%c0_15, %c0_16], %20 {strides = array<i32>} : memref<1x128xf32, #tpu.memory_space<vmem>>, vector<1x128xf32>,
    return
  }
  func.func @transform_0(%arg0: i32) -> (i32, i32) {
    %c0_i32 = arith.constant 0 : i32
    %c0_i32_0 = arith.constant 0 : i32
    return %arg0, %c0_i32 : i32, i32
  }
  func.func @transform_1(%arg0: i32) -> (i32, i32) {
    %c0_i32 = arith.constant 0 : i32
    %c0_i32_0 = arith.constant 0 : i32
    %c0_i32_1 = arith.constant 0 : i32
    return %c0_i32, %c0_i32_0 : i32, i32
  }
  func.func @transform_2(%arg0: i32) -> (i32, i32) {
    %c0_i32 = arith.constant 0 : i32
    %c0_i32_0 = arith.constant 0 : i32
    %c0_i32_1 = arith.constant 0 : i32
    return %c0_i32, %c0_i32_0 : i32, i32
  }
  func.func @transform_3(%arg0: i32) -> (i32, i32) {
    %c0_i32 = arith.constant 0 : i32
    %c0_i32_0 = arith.constant 0 : i32
    %c0_i32_1 = arith.constant 0 : i32
    return %c0_i32, %c0_i32_0 : i32, i32
  }
  func.func @transform_4(%arg0: i32) -> (i32, i32) {
    %c0_i32 = arith.constant 0 : i32
    %c0_i32_0 = arith.constant 0 : i32
    %c0_i32_1 = arith.constant 0 : i32
    return %c0_i32, %c0_i32_0 : i32, i32
  }
}

</mosaic_0001>

<llo_original>
// kernel: tpu_custom_call.1
$region0: #{tpu_custom_call.1}
  #allocation0 [shape = 'u32[]', space=smem, size = 0x4, offset = 0x4, fixed_abs, tag = 'smem constant byte address 0x4 - core index']
  #allocation1 [shape = 'u32[144,128]{1,0:T(1,128)}', space=vmem, size = 0x12000, scoped, tag = 'internal scratch']
  %s0 = inlined_call_operand.hbm [shape: f32[16,128], index: 0, kind: input, shape index: {}]
  %s1 = inlined_call_operand.hbm [shape: f32[128,128], index: 1, kind: input, shape index: {}]
  %s2 = inlined_call_operand.vmem [shape: f32[1,128], index: 2, kind: input, shape index: {}]
  %s3 = inlined_call_operand.hbm [shape: f32[1,128], index: 3, kind: output, shape index: {0}]
  %s4 = inlined_call_operand.hbm [shape: f32[1,128], index: 4, kind: output, shape index: {1}]
  %5 = xla_tuple %s3, %s4
  %s6 = sld [smem:[#allocation0]]
  $region42: #{tpu_custom_call.1} parent=0
    _
  %s8 = ssub.s32 1, %s6
  %s9 = scalar_select 0, %s8, %s6
  $region1: #{tpu_custom_call.1} parent=0
    #allocation2 [shape = 'u8[8192]{0}', space=vmem, size = 0x2000, scoped, tag = 'input window, operand 0, single buffered']
    #allocation3 [shape = 's32[1]{0}', space=sflag, size = 0x4, scoped, tag = 'scoped memory for tpu_custom_call.1']
    #allocation4 [shape = 's32[1]{0}', space=sflag, size = 0x4, scoped, tag = 'scoped memory for tpu_custom_call.1']
    #allocation5 [shape = 'u8[65536]{0}', space=vmem, size = 0x10000, scoped, tag = 'input window, operand 1, single buffered']
    #allocation6 [shape = 's32[1]{0}', space=sflag, size = 0x4, scoped, tag = 'scoped memory for tpu_custom_call.1']
    #allocation7 [shape = 'u8[512]{0}', space=vmem, size = 0x400, scoped, tag = 'output window, operand 0, single buffered']
    #allocation8 [shape = 'u8[512]{0}', space=vmem, size = 0x400, scoped, tag = 'output window, operand 1, single buffered']
    #allocation9 [shape = 's32[1]{0}', space=sflag, size = 0x4, scoped, tag = 'scoped memory for tpu_custom_call.1']
    %10 = vsyncpa [#allocation3], 0
    %11 = vsyncpa [#allocation6], 0
    %12 = vsyncpa [#allocation4], 0
    %13 = vsyncpa [#allocation9], 0
    // Predicated region
    $region2: #{tpu_custom_call.1} parent=1 // pred_check
      _
    $region3: #{tpu_custom_call.1} parent=1 // pred_check_branch
      %15 = sbr.rel (0) target = $region5
    $region4: #{tpu_custom_call.1} parent=1 // pred_region
      %s17 = ssub.s32 256, 256
      %18 = vsyncadd [#allocation3], %s17
      %s19 = sshll.u32 [#allocation2], 4
      %s20 = int_to_ptr.vmem [resolvable:$true] %s19
      %25 = dma.hbm_to_vmem [thread:$0]  %s0, 256, %s20, [#allocation3], 128, 128, 8
    $region5: #{tpu_custom_call.1} parent=1 // pred_fallthru
      _
    // Predicated region
    $region6: #{tpu_custom_call.1} parent=1 // pred_check
      _
    $region7: #{tpu_custom_call.1} parent=1 // pred_check_branch
      %27 = sbr.rel (0) target = $region9
    $region8: #{tpu_custom_call.1} parent=1 // pred_region
      %s29 = ssub.s32 2048, 2048
      %30 = vsyncadd [#allocation6], %s29
      %s31 = sshll.u32 [#allocation5], 4
      %s32 = int_to_ptr.vmem [resolvable:$true] %s31
      %37 = dma.hbm_to_vmem [thread:$0]  %s1, 2048, %s32, [#allocation6], 128, 128, 8
    $region9: #{tpu_custom_call.1} parent=1 // pred_fallthru
      _
    // Predicated region
    $region10: #{tpu_custom_call.1} parent=1 // pred_check
      _
    $region11: #{tpu_custom_call.1} parent=1 // pred_check_branch
      %39 = sbr.rel (0) target = $region13
    $region12: #{tpu_custom_call.1} parent=1 // pred_region
      _
    $region13: #{tpu_custom_call.1} parent=1 // pred_fallthru
      _
    // Predicated region
    $region14: #{tpu_custom_call.1} parent=1 // pred_check
      _
    $region15: #{tpu_custom_call.1} parent=1 // pred_check_branch
      %41 = sbr.rel (0) target = $region17
    $region16: #{tpu_custom_call.1} parent=1 // pred_region
      %42 = dma.done [#allocation3], 256
    $region17: #{tpu_custom_call.1} parent=1 // pred_fallthru
      _
    // Predicated region
    $region18: #{tpu_custom_call.1} parent=1 // pred_check
      _
    $region19: #{tpu_custom_call.1} parent=1 // pred_check_branch
      %44 = sbr.rel (0) target = $region21
    $region20: #{tpu_custom_call.1} parent=1 // pred_region
      %45 = dma.done [#allocation6], 2048
    $region21: #{tpu_custom_call.1} parent=1 // pred_fallthru
      _
    %p46 = scmp.eq.s32.totalorder 0, 0
    // Predicated region
    $region22: #{tpu_custom_call.1} parent=1 // pred_check
      %p47 = pneg %p46
    $region23: #{tpu_custom_call.1} parent=1 // pred_check_branch
      %49 = sbr.rel (%p47) target = $region25
    $region24: #{tpu_custom_call.1} parent=1 // pred_region
      %50 = vst [vmem:[#allocation7] sm:$0x1] 0.0
      %51 = vst [vmem:[#allocation8] sm:$0x1] 0.0
    $region25: #{tpu_custom_call.1} parent=1 // pred_fallthru
      _
    %v52 = vld [vmem:[#allocation2] sm:$0xff]
    %v53 = vld [vmem:[#allocation2 + $0x8] sm:$0xff]
    %v54 = vld [vmem:[#allocation5] sm:$0xff]
    %v55 = vld [vmem:[#allocation5 + $0x8] sm:$0xff]
    %v56 = vld [vmem:[#allocation5 + $0x10] sm:$0xff]
    %v57 = vld [vmem:[#allocation5 + $0x18] sm:$0xff]
    %v58 = vld [vmem:[#allocation5 + $0x20] sm:$0xff]
    %v59 = vld [vmem:[#allocation5 + $0x28] sm:$0xff]
    %v60 = vld [vmem:[#allocation5 + $0x30] sm:$0xff]
    %v61 = vld [vmem:[#allocation5 + $0x38] sm:$0xff]
    %v62 = vld [vmem:[#allocation5 + $0x40] sm:$0xff]
    %v63 = vld [vmem:[#allocation5 + $0x48] sm:$0xff]
    %v64 = vld [vmem:[#allocation5 + $0x50] sm:$0xff]
    %v65 = vld [vmem:[#allocation5 + $0x58] sm:$0xff]
    %v66 = vld [vmem:[#allocation5 + $0x60] sm:$0xff]
    %v67 = vld [vmem:[#allocation5 + $0x68] sm:$0xff]
    %v68 = vld [vmem:[#allocation5 + $0x70] sm:$0xff]
    %v69 = vld [vmem:[#allocation5 + $0x78] sm:$0xff]
    %v70 = vld [vmem:[%s2] sm:$0x1]
    %v72 = vlaneseq
    %v73 = vshrl.u32 %v72, 7
    %v74 = vsub.s32 0, %v73
    %v75 = vrot.slane %v70, %v74
    %77 = vmatprep.subr.mxu0 0.0
    %78 = vmatpush1.msra.mxu0 %v69
    %79 = vmatprep.subr.mxu0 0.0
    %80 = vmatpush1.msra.mxu0 %v68
    %81 = vmatprep.subr.mxu0 0.0
    %82 = vmatpush1.msra.mxu0 %v67
    %83 = vmatprep.subr.mxu0 0.0
    %84 = vmatpush1.msra.mxu0 %v66
    %85 = vmatprep.subr.mxu0 0.0
    %86 = vmatpush1.msra.mxu0 %v65
    %87 = vmatprep.subr.mxu0 0.0
    %88 = vmatpush1.msra.mxu0 %v64
    %89 = vmatprep.subr.mxu0 0.0
    %90 = vmatpush1.msra.mxu0 %v63
    %91 = vmatprep.subr.mxu0 0.0
    %92 = vmatpush1.msra.mxu0 %v62
    %93 = vmatprep.subr.mxu0 0.0
    %94 = vmatpush1.msra.mxu0 %v61
    %95 = vmatprep.subr.mxu0 0.0
    %96 = vmatpush1.msra.mxu0 %v60
    %97 = vmatprep.subr.mxu0 0.0
    %98 = vmatpush1.msra.mxu0 %v59
    %99 = vmatprep.subr.mxu0 0.0
    %100 = vmatpush1.msra.mxu0 %v58
    %101 = vmatprep.subr.mxu0 0.0
    %102 = vmatpush1.msra.mxu0 %v57
    %103 = vmatprep.subr.mxu0 0.0
    %104 = vmatpush1.msra.mxu0 %v56
    %105 = vmatprep.subr.mxu0 0.0
    %106 = vmatpush1.msra.mxu0 %v55
    %107 = vmatprep.subr.mxu0 0.0
    %108 = vmatpush1.msra.mxu0 %v54
    %109 = vmatprep.subr.mxu0 0.0
    %110 = vmatpush2.msra.mxu0 0.0
    %111 = vmatprep.subr.mxu0 0.0
    %112 = vmatpush2.msra.mxu0 0.0
    %113 = vmatprep.subr.mxu0 0.0
    %114 = vmatpush2.msra.mxu0 0.0
    %115 = vmatprep.subr.mxu0 0.0
    %116 = vmatpush2.msra.mxu0 0.0
    %117 = vmatprep.subr.mxu0 0.0
    %118 = vmatpush2.msra.mxu0 0.0
    %119 = vmatprep.subr.mxu0 0.0
    %120 = vmatpush2.msra.mxu0 0.0
    %121 = vmatprep.subr.mxu0 0.0
    %122 = vmatpush2.msra.mxu0 0.0
    %123 = vmatprep.subr.mxu0 0.0
    %124 = vmatpush2.msra.mxu0 0.0
    %125 = vmatprep.subr.mxu0 0.0
    %126 = vmatpush2.msra.mxu0 0.0
    %127 = vmatprep.subr.mxu0 0.0
    %128 = vmatpush2.msra.mxu0 0.0
    %129 = vmatprep.subr.mxu0 0.0
    %130 = vmatpush2.msra.mxu0 0.0
    %131 = vmatprep.subr.mxu0 0.0
    %132 = vmatpush2.msra.mxu0 0.0
    %133 = vmatprep.subr.mxu0 0.0
    %134 = vmatpush2.msra.mxu0 0.0
    %135 = vmatprep.subr.mxu0 0.0
    %136 = vmatpush2.msra.mxu0 0.0
    %137 = vmatprep.subr.mxu0 0.0
    %138 = vmatpush2.msra.mxu0 0.0
    %139 = vmatprep.subr.mxu0 0.0
    %140 = vmatpush2.msra.mxu0 0.0
    %141 = vmatprep.mubr.f32.mxu0 0.0
    %142 = vmatmul.mubr.f32.gmra.mxu0 %v52
    %v143 = vpop.f32.mrf.mxu0
    %v144 = vadd.f32 %v75, %v143
    %v145 = vpop.f32.mrf.mxu0
    %146 = vmatprep.mubr.f32.mxu0 0.0
    %147 = vmatmul.mubr.f32.gmra.mxu0 %v53
    %v148 = vpop.f32.mrf.mxu0
    %v149 = vadd.f32 %v75, %v148
    %v150 = vpop.f32.mrf.mxu0
    %151 = vdwg.mxu0
    %v152 = vmax.f32 %v144, 0.0
    %v153 = vmax.f32 %v149, 0.0
    %v154 = vld [vmem:[#allocation7] sm:$0x1]
    %v155 = vadd.f32 %v152, %v153
    %v156 = vrot.slane %v155, 4
    %v157 = vadd.f32 %v155, %v156
    %v158 = vrot.slane %v157, 2
    %v159 = vadd.f32 %v157, %v158
    %v160 = vrot.slane %v159, 1
    %v161 = vadd.f32 %v159, %v160
    %v162 = vadd.f32 %v154, %v161
    %163 = vst [vmem:[#allocation7] sm:$0x1] %v162
    %v164 = vld [vmem:[#allocation8] sm:$0x1]
    %v165 = vmul.f32 %v152, %v152
    %v166 = vmul.f32 %v153, %v153
    %v167 = vadd.f32 %v165, %v166
    %v168 = vrot.slane %v167, 4
    %v169 = vadd.f32 %v167, %v168
    %v170 = vrot.slane %v169, 2
    %v171 = vadd.f32 %v169, %v170
    %v172 = vrot.slane %v171, 1
    %v173 = vadd.f32 %v171, %v172
    %v174 = vadd.f32 %v164, %v173
    %175 = vst [vmem:[#allocation8] sm:$0x1] %v174
    // Predicated region
    $region26: #{tpu_custom_call.1} parent=1 // pred_check
      _
    $region27: #{tpu_custom_call.1} parent=1 // pred_check_branch
      %177 = sbr.rel (0) target = $region29
    $region28: #{tpu_custom_call.1} parent=1 // pred_region
      %s179 = ssub.s32 16, 16
      %180 = vsyncadd [#allocation4], %s179
      %s182 = sshll.u32 [#allocation7], 4
      %s183 = int_to_ptr.vmem [resolvable:$true] %s182
      %185 = dma.vmem_to_hbm [thread:$0]  %s183, 16, %s3, [#allocation4]
    $region29: #{tpu_custom_call.1} parent=1 // pred_fallthru
      _
    // Predicated region
    $region30: #{tpu_custom_call.1} parent=1 // pred_check
      _
    $region31: #{tpu_custom_call.1} parent=1 // pred_check_branch
      %187 = sbr.rel (0) target = $region33
    $region32: #{tpu_custom_call.1} parent=1 // pred_region
      %s189 = ssub.s32 16, 16
      %190 = vsyncadd [#allocation9], %s189
      %s192 = sshll.u32 [#allocation8], 4
      %s193 = int_to_ptr.vmem [resolvable:$true] %s192
      %195 = dma.vmem_to_hbm [thread:$0]  %s193, 16, %s4, [#allocation9]
    $region33: #{tpu_custom_call.1} parent=1 // pred_fallthru
      _
    // Predicated region
    $region34: #{tpu_custom_call.1} parent=1 // pred_check
      _
    $region35: #{tpu_custom_call.1} parent=1 // pred_check_branch
      %197 = sbr.rel (0) target = $region37
    $region36: #{tpu_custom_call.1} parent=1 // pred_region
      %198 = dma.done [#allocation4], 16
    $region37: #{tpu_custom_call.1} parent=1 // pred_fallthru
      _
    // Predicated region
    $region38: #{tpu_custom_call.1} parent=1 // pred_check
      _
    $region39: #{tpu_custom_call.1} parent=1 // pred_check_branch
      %200 = sbr.rel (0) target = $region41
    $region40: #{tpu_custom_call.1} parent=1 // pred_region
      %201 = dma.done [#allocation9], 16
    $region41: #{tpu_custom_call.1} parent=1 // pred_fallthru
      _
    %202 = vsyncpa [#allocation3], 1
    %203 = vsyncpa [#allocation6], 1
    %204 = vsyncpa [#allocation4], 1
    %205 = vsyncpa [#allocation9], 1

</llo_original>
